<compile_context>
chip_gen: v7x
topology: tpu7x:2x2x1
jax: 0.10.0
libtpu: 0.0.40
codegen_flags: <defaults>
</compile_context>

<pallas_src>
import jax
import jax.numpy as jnp
from jax.experimental import pallas as pl
from jax.experimental.pallas import tpu as pltpu

_LANE = 128


def _round_up(n, m):
    return ((n + m - 1) // m) * m


def _mlp_kernel(x_ref, w1_ref, b1_ref, w2_ref, b2_ref, o_ref):
    # hidden = sigmoid(x @ W1 + b1); MXU accumulates in f32, bias/sigmoid in f32.
    h = jnp.dot(x_ref[...], w1_ref[...], preferred_element_type=jnp.float32)
    h = jax.nn.sigmoid(h + b1_ref[...])
    # out = hidden @ W2 + b2
    y = jnp.dot(h.astype(w2_ref.dtype), w2_ref[...],
                preferred_element_type=jnp.float32)
    o_ref[...] = (y + b2_ref[...]).astype(o_ref.dtype)


def prepare_params(w1, b1, w2, b2, compute_dtype=jnp.bfloat16):
    """One-time weight prep (call OUTSIDE jit): pad the hidden dim to a lane
    multiple and cast the matmul operands to the MXU compute dtype.

    Zero padding is inert: padded hidden columns see b1 = 0 -> sigmoid(0) = 0.5,
    but multiply zero-padded rows of W2, contributing exactly 0 to the output.
    Biases stay f32 (they are added to the f32 accumulator inside the kernel).
    """
    H = w1.shape[1]
    Hp = _round_up(H, _LANE)
    w1p = jnp.pad(w1, ((0, 0), (0, Hp - H))).astype(compute_dtype)
    b1p = jnp.pad(b1, ((0, 0), (0, Hp - H))).astype(jnp.float32)
    w2p = jnp.pad(w2, ((0, Hp - H), (0, 0))).astype(compute_dtype)
    b2p = b2.astype(jnp.float32)
    return w1p, b1p, w2p, b2p


def net_forward(x, w1, b1, w2, b2, *, block_b=4096, gridless_max_b=256):
    """Fused MLP forward: sigmoid(x @ W1 + b1) @ W2 + b2.

    x: [B, F]; w1: [F, H]; b1: [1, H]; w2: [H, O]; b2: [1, O]
    (H may be pre-padded by prepare_params; F/O/B are never padded in HBM).
    """
    assert block_b % 32 == 0, "block_b must be a multiple of 32"
    B, F = x.shape
    H = w1.shape[1]
    O = w2.shape[1]
    out_dtype = x.dtype
    xc = x.astype(w1.dtype)  # bf16 matmul input when params were prepared as bf16

    cost = pl.CostEstimate(
        flops=2 * B * (F * H + H * O),
        transcendentals=B * H,  # sigmoid
        bytes_accessed=(B * F * xc.dtype.itemsize
                        + B * O * out_dtype.itemsize
                        + w1.size * w1.dtype.itemsize
                        + b1.size * b1.dtype.itemsize
                        + w2.size * w2.dtype.itemsize
                        + b2.size * b2.dtype.itemsize),
    )

    if B <= gridless_max_b:
        # Small batch: gridless call, everything VMEM-resident, no pipeline
        # prologue/epilogue.  Whole-array blocks are exempt from (8,128).
        vmem = pl.BlockSpec(memory_space=pltpu.MemorySpace.VMEM)
        return pl.pallas_call(
            _mlp_kernel,
            out_shape=jax.ShapeDtypeStruct((B, O), out_dtype),
            in_specs=[vmem, vmem, vmem, vmem, vmem],
            out_specs=vmem,
            cost_estimate=cost,
        )(xc, w1, b1, w2, b2)

    # Batch-tiled path: tile only the batch axis.  Weights/biases use constant
    # index maps so they stay VMEM-resident across grid steps.  Block rows are
    # a multiple of 32 (covers f32/bf16 sublane packing); the feature/output
    # widths use the full-array-dim exemption so x/out stay lane-narrow in HBM.
    bb = min(block_b, _round_up(B, 32))
    grid = (pl.cdiv(B, bb),)
    return pl.pallas_call(
        _mlp_kernel,
        out_shape=jax.ShapeDtypeStruct((B, O), out_dtype),
        grid=grid,
        in_specs=[
            pl.BlockSpec((bb, F), lambda i: (i, 0)),
            pl.BlockSpec((F, H), lambda i: (0, 0)),
            pl.BlockSpec((1, H), lambda i: (0, 0)),
            pl.BlockSpec((H, O), lambda i: (0, 0)),
            pl.BlockSpec((1, O), lambda i: (0, 0)),
        ],
        out_specs=pl.BlockSpec((bb, O), lambda i: (i, 0)),
        # On v7x use pltpu.CORE_PARALLEL here to shard the batch axis across
        # the 2 TensorCores; "parallel" is safe on all generations.
        compiler_params=pltpu.CompilerParams(
            dimension_semantics=("parallel",),
        ),
        cost_estimate=cost,
    )(xc, w1, b1, w2, b2)


def init_params(key, n_feature, n_neurons, n_output, dtype=jnp.float32):
    """Deterministic init mimicking nn.Linear's U(-1/sqrt(fan_in), 1/sqrt(fan_in))."""
    k1, k2, k3, k4 = jax.random.split(key, 4)
    bound1 = 1.0 / jnp.sqrt(jnp.float32(n_feature))
    bound2 = 1.0 / jnp.sqrt(jnp.float32(n_neurons))
    # Stored as [in, out] (transposed vs PyTorch's [out, in]).
    w1 = jax.random.uniform(k1, (n_feature, n_neurons), dtype, -bound1, bound1)
    b1 = jax.random.uniform(k2, (1, n_neurons), dtype, -bound1, bound1)
    w2 = jax.random.uniform(k3, (n_neurons, n_output), dtype, -bound2, bound2)
    b2 = jax.random.uniform(k4, (1, n_output), dtype, -bound2, bound2)
    return w1, b1, w2, b2


def _reference(x, w1, b1, w2, b2):
    return jax.nn.sigmoid(x @ w1 + b1) @ w2 + b2


if __name__ == "__main__":
    n_feature, n_neurons, n_output = 16, 32, 8

    key = jax.random.PRNGKey(0)
    kx, kp, kx2, kx3 = jax.random.split(key, 4)
    w1, b1, w2, b2 = init_params(kp, n_feature, n_neurons, n_output)

    # One-time weight prep (outside jit): pad hidden dim, cast matmuls to bf16.
    pw1, pb1, pw2, pb2 = prepare_params(w1, b1, w2, b2, compute_dtype=jnp.bfloat16)

    fwd = jax.jit(net_forward)

    def check(x):
        out = jax.block_until_ready(fwd(x, pw1, pb1, pw2, pb2))
        ref = _reference(x, w1, b1, w2, b2)
        assert out.shape == ref.shape, (out.shape, ref.shape)
        # bf16 matmul operands with f32 accumulation -> loose tolerance.
        assert jnp.allclose(out, ref, atol=3e-2, rtol=3e-2), float(
            jnp.max(jnp.abs(out - ref)))

    # Small batches -> gridless VMEM-resident path (any B, no padding, no slice).
    check(jax.random.normal(kx, (8, n_feature), jnp.float32))
    check(jax.random.normal(kx3, (13, n_feature), jnp.float32))

    # Larger batch -> batch-tiled path; 5000 is not a multiple of the 4096-row
    # block, exercising the cdiv grid with a ragged (write-masked) last block.
    check(jax.random.normal(kx2, (5000, n_feature), jnp.float32))

    print("KERNEL_OK")
</pallas_src>

<mosaic_0001>
module attributes {stable_mosaic.version = 11 : i64} {
  func.func @_mlp_kernel(%arg0: memref<8x16xbf16, #tpu.memory_space<vmem>>, %arg1: memref<16x128xbf16, #tpu.memory_space<vmem>>, %arg2: memref<1x128xf32, #tpu.memory_space<vmem>>, %arg3: memref<128x8xbf16, #tpu.memory_space<vmem>>, %arg4: memref<1x8xf32, #tpu.memory_space<vmem>>, %arg5: memref<8x8xf32, #tpu.memory_space<vmem>>) attributes {dimension_semantics = [], scalar_prefetch = 0 : i64, scratch_operands = 0 : i64, tpu.core_type = #tpu.core_type<tc>} {
    %c0 = arith.constant 0 : index
    %c0_0 = arith.constant 0 : index
    %0 = vector.load %arg0[%c0, %c0_0] : memref<8x16xbf16, #tpu.memory_space<vmem>>, vector<8x16xbf16>
    %c0_1 = arith.constant 0 : index
    %c0_2 = arith.constant 0 : index
    %1 = vector.load %arg1[%c0_1, %c0_2] : memref<16x128xbf16, #tpu.memory_space<vmem>>, vector<16x128xbf16>
    %cst = arith.constant dense<0.000000e+00> : vector<8x128xf32>
    %2 = tpu.matmul %0, %1, %cst {dimension_numbers = #tpu.dot_dimension_numbers<[1], [0], [0], [1], [0, 0, 1, 1], [], []>} : vector<8x16xbf16>, vector<16x128xbf16>, vector<8x128xf32> -> vector<8x128xf32>
    %c0_3 = arith.constant 0 : index
    %c0_4 = arith.constant 0 : index
    %3 = vector.load %arg2[%c0_3, %c0_4] : memref<1x128xf32, #tpu.memory_space<vmem>>, vector<1x128xf32>
    %4 = vector.broadcast %3 : vector<1x128xf32> to vector<8x128xf32>
    %5 = arith.addf %2, %4 : vector<8x128xf32>
    %6 = arith.negf %5 : vector<8x128xf32>
    %7 = math.exp %6 : vector<8x128xf32>
    %cst_5 = arith.constant 1.000000e+00 : f32
    %8 = vector.broadcast %cst_5 : f32 to vector<8x128xf32>
    %9 = arith.addf %8, %7 : vector<8x128xf32>
    %10 = arith.divf %8, %9 : vector<8x128xf32>
    %11 = arith.truncf %10 : vector<8x128xf32> to vector<8x128xbf16>
    %c0_6 = arith.constant 0 : index
    %c0_7 = arith.constant 0 : index
    %12 = vector.load %arg3[%c0_6, %c0_7] : memref<128x8xbf16, #tpu.memory_space<vmem>>, vector<128x8xbf16>
    %cst_8 = arith.constant dense<0.000000e+00> : vector<8x8xf32>
    %13 = tpu.matmul %11, %12, %cst_8 {dimension_numbers = #tpu.dot_dimension_numbers<[1], [0], [0], [1], [0, 0, 1, 1], [], []>} : vector<8x128xbf16>, vector<128x8xbf16>, vector<8x8xf32> -> vector<8x8xf32>
    %c0_9 = arith.constant 0 : index
    %c0_10 = arith.constant 0 : index
    %14 = vector.load %arg4[%c0_9, %c0_10] : memref<1x8xf32, #tpu.memory_space<vmem>>, vector<1x8xf32>
    %15 = vector.broadcast %14 : vector<1x8xf32> to vector<8x8xf32>
    %16 = arith.addf %13, %15 : vector<8x8xf32>
    %c0_11 = arith.constant 0 : index
    %c0_12 = arith.constant 0 : index
    %17 = vector.load %arg5[%c0_11, %c0_12] : memref<8x8xf32, #tpu.memory_space<vmem>>, vector<8x8xf32>
    tpu.vector_store %arg5[%c0_11, %c0_12], %16 {strides = array<i32>} : memref<8x8xf32, #tpu.memory_space<vmem>>, vector<8x8xf32>,
    return
  }
}

</mosaic_0001>

<llo_original>
// kernel: net_forward.1
$region0: #{net_forward.1}
  #allocation0 [shape = 'u32[]', space=smem, size = 0x4, offset = 0x4, fixed_abs, tag = 'smem constant byte address 0x4 - core index']
  #allocation1 [shape = 'u32[144,128]{1,0:T(1,128)}', space=vmem, size = 0x12000, scoped, tag = 'internal scratch']
  %s0 = inlined_call_operand.vmem [shape: bf16[8,16], index: 0, kind: input, shape index: {}]
  %s1 = inlined_call_operand.vmem [shape: bf16[16,128], index: 1, kind: input, shape index: {}]
  %s2 = inlined_call_operand.vmem [shape: f32[1,128], index: 2, kind: input, shape index: {}]
  %s3 = inlined_call_operand.vmem [shape: bf16[128,8], index: 3, kind: input, shape index: {}]
  %s4 = inlined_call_operand.vmem [shape: f32[1,8], index: 4, kind: input, shape index: {}]
  %s5 = inlined_call_operand.hbm [shape: f32[8,8], index: 5, kind: output, shape index: {}]
  %s6 = sld [smem:[#allocation0]]
  $region30: #{net_forward.1} parent=0
    _
  %s8 = ssub.s32 1, %s6
  %s9 = scalar_select 0, %s8, %s6
  $region1: #{net_forward.1} parent=0
    #allocation2 [shape = 'u8[4096]{0}', space=vmem, size = 0x1000, scoped, tag = 'output window, operand 0, single buffered']
    #allocation3 [shape = 's32[1]{0}', space=sflag, size = 0x4, scoped, tag = 'scoped memory for net_forward.1']
    %10 = vsyncpa [#allocation3], 0
    // Predicated region
    $region2: #{net_forward.1} parent=1 // pred_check
      _
    $region3: #{net_forward.1} parent=1 // pred_check_branch
      %12 = sbr.rel (0) target = $region5
    $region4: #{net_forward.1} parent=1 // pred_region
      _
    $region5: #{net_forward.1} parent=1 // pred_fallthru
      _
    // Predicated region
    $region6: #{net_forward.1} parent=1 // pred_check
      _
    $region7: #{net_forward.1} parent=1 // pred_check_branch
      %14 = sbr.rel (0) target = $region9
    $region8: #{net_forward.1} parent=1 // pred_region
      _
    $region9: #{net_forward.1} parent=1 // pred_fallthru
      _
    // Predicated region
    $region10: #{net_forward.1} parent=1 // pred_check
      _
    $region11: #{net_forward.1} parent=1 // pred_check_branch
      %16 = sbr.rel (0) target = $region13
    $region12: #{net_forward.1} parent=1 // pred_region
      _
    $region13: #{net_forward.1} parent=1 // pred_fallthru
      _
    // Predicated region
    $region14: #{net_forward.1} parent=1 // pred_check
      _
    $region15: #{net_forward.1} parent=1 // pred_check_branch
      %18 = sbr.rel (0) target = $region17
    $region16: #{net_forward.1} parent=1 // pred_region
      _
    $region17: #{net_forward.1} parent=1 // pred_fallthru
      _
    // Predicated region
    $region18: #{net_forward.1} parent=1 // pred_check
      _
    $region19: #{net_forward.1} parent=1 // pred_check_branch
      %20 = sbr.rel (0) target = $region21
    $region20: #{net_forward.1} parent=1 // pred_region
      _
    $region21: #{net_forward.1} parent=1 // pred_fallthru
      _
    %v22 = vld [vmem:[%s0] sm:$0xf]
    %v23 = vld [vmem:[%s1] sm:$0xf]
    %v24 = vld [vmem:[%s1 + $0x4] sm:$0xf]
    %v25 = vld [vmem:[%s2] sm:$0x1]
    %v27 = vlaneseq
    %v28 = vshrl.u32 %v27, 7
    %v29 = vsub.s32 0, %v28
    %v30 = vrot.slane %v25, %v29
    %v34 = vunpack.c.l.b16 %v23
    %v35 = vunpack.c.l.b16 %v24
    %v36 = vpack.c.b16 %v35, %v34
    %vm38 = vcmask 130048
    %v40 = vsel %vm38, %v22, 0
    %42 = vmatprep.subr.bf16.mxu0 0
    %43 = vmatpush1.bf16.msra.mxu0 %v36
    %44 = vmatprep.subr.bf16.mxu0 0
    %45 = vmatpush1.bf16.msra.mxu0 0
    %46 = vmatprep.subr.bf16.mxu0 0
    %47 = vmatpush1.bf16.msra.mxu0 0
    %48 = vmatprep.subr.bf16.mxu0 0
    %49 = vmatpush1.bf16.msra.mxu0 0
    %50 = vmatprep.subr.bf16.mxu0 0
    %51 = vmatpush1.bf16.msra.mxu0 0
    %52 = vmatprep.subr.bf16.mxu0 0
    %53 = vmatpush1.bf16.msra.mxu0 0
    %54 = vmatprep.subr.bf16.mxu0 0
    %55 = vmatpush1.bf16.msra.mxu0 0
    %56 = vmatprep.subr.bf16.mxu0 0
    %57 = vmatpush1.bf16.msra.mxu0 0
    %58 = vmatprep.subr.bf16.mxu0 0
    %59 = vmatpush1.bf16.msra.mxu0 0
    %60 = vmatprep.subr.bf16.mxu0 0
    %61 = vmatpush1.bf16.msra.mxu0 0
    %62 = vmatprep.subr.bf16.mxu0 0
    %63 = vmatpush1.bf16.msra.mxu0 0
    %64 = vmatprep.subr.bf16.mxu0 0
    %65 = vmatpush1.bf16.msra.mxu0 0
    %66 = vmatprep.subr.bf16.mxu0 0
    %67 = vmatpush1.bf16.msra.mxu0 0
    %68 = vmatprep.subr.bf16.mxu0 0
    %69 = vmatpush1.bf16.msra.mxu0 0
    %70 = vmatprep.subr.bf16.mxu0 0
    %71 = vmatpush1.bf16.msra.mxu0 0
    %72 = vmatprep.subr.bf16.mxu0 0
    %73 = vmatpush1.bf16.msra.mxu0 0
    %74 = vmatprep.mubr.bf16.mxu0 0
    %75 = vmatmul.mubr.bf16.gmra.mrb[0].mxu0 %v40
    %v76 = vpop.f32.mrb[0].mxu0
    %v77 = vadd.f32 %v30, %v76
    %v78 = vpop.f32.mrb[0].mxu0
    %v79 = vpop.f32.mrb[0].mxu0
    %v80 = vpop.f32.mrb[0].mxu0
    %81 = vdwg.mxu0
    %v82 = vxor.u32 %v77, 2147483648
    %v83 = vmul.f32 %v82, 1.442695
    %v84 = vpow.pop %v83
    %v85 = vadd.f32 %v84, 1.0
    %v86 = vrcp.pop %v85
    %v87 = vmul.f32 1.0, %v86
    %v88 = vpack.c.bf16 %v87, %v87
    %v89 = vld [vmem:[%s3] sm:$0xf]
    %v90 = vld [vmem:[%s3 + $0x4] sm:$0xf]
    %v91 = vld [vmem:[%s3 + $0x8] sm:$0xf]
    %v92 = vld [vmem:[%s3 + $0xc] sm:$0xf]
    %v93 = vld [vmem:[%s3 + $0x10] sm:$0xf]
    %v94 = vld [vmem:[%s3 + $0x14] sm:$0xf]
    %v95 = vld [vmem:[%s3 + $0x18] sm:$0xf]
    %v96 = vld [vmem:[%s3 + $0x1c] sm:$0xf]
    %v97 = vld [vmem:[%s3 + $0x20] sm:$0xf]
    %v98 = vld [vmem:[%s3 + $0x24] sm:$0xf]
    %v99 = vld [vmem:[%s3 + $0x28] sm:$0xf]
    %v100 = vld [vmem:[%s3 + $0x2c] sm:$0xf]
    %v101 = vld [vmem:[%s3 + $0x30] sm:$0xf]
    %v102 = vld [vmem:[%s3 + $0x34] sm:$0xf]
    %v103 = vld [vmem:[%s3 + $0x38] sm:$0xf]
    %v104 = vld [vmem:[%s3 + $0x3c] sm:$0xf]
    %v105 = vld [vmem:[%s4] sm:$0x1]
    %v107 = vlaneseq
    %v108 = vshrl.u32 %v107, 7
    %v109 = vsub.s32 0, %v108
    %v110 = vrot.slane %v105, %v109
    %v128 = vunpack.c.l.b16 %v89
    %v129 = vunpack.c.l.b16 %v90
    %v130 = vunpack.c.l.b16 %v91
    %v131 = vunpack.c.l.b16 %v92
    %v132 = vunpack.c.l.b16 %v93
    %v133 = vunpack.c.l.b16 %v94
    %v134 = vunpack.c.l.b16 %v95
    %v135 = vunpack.c.l.b16 %v96
    %v136 = vunpack.c.l.b16 %v97
    %v137 = vunpack.c.l.b16 %v98
    %v138 = vunpack.c.l.b16 %v99
    %v139 = vunpack.c.l.b16 %v100
    %v140 = vunpack.c.l.b16 %v101
    %v141 = vunpack.c.l.b16 %v102
    %v142 = vunpack.c.l.b16 %v103
    %v143 = vunpack.c.l.b16 %v104
    %v144 = vpack.c.b16 %v129, %v128
    %v145 = vpack.c.b16 %v131, %v130
    %v146 = vpack.c.b16 %v133, %v132
    %v147 = vpack.c.b16 %v135, %v134
    %v148 = vpack.c.b16 %v137, %v136
    %v149 = vpack.c.b16 %v139, %v138
    %v150 = vpack.c.b16 %v141, %v140
    %v151 = vpack.c.b16 %v143, %v142
    %160 = vmatprep.subr.bf16.mxu0 0
    %161 = vmatpush1.bf16.msra.mxu0 %v144
    %162 = vmatprep.subr.bf16.mxu0 0
    %163 = vmatpush1.bf16.msra.mxu0 %v145
    %164 = vmatprep.subr.bf16.mxu0 0
    %165 = vmatpush1.bf16.msra.mxu0 %v146
    %166 = vmatprep.subr.bf16.mxu0 0
    %167 = vmatpush1.bf16.msra.mxu0 %v147
    %168 = vmatprep.subr.bf16.mxu0 0
    %169 = vmatpush1.bf16.msra.mxu0 %v148
    %170 = vmatprep.subr.bf16.mxu0 0
    %171 = vmatpush1.bf16.msra.mxu0 %v149
    %172 = vmatprep.subr.bf16.mxu0 0
    %173 = vmatpush1.bf16.msra.mxu0 %v150
    %174 = vmatprep.subr.bf16.mxu0 0
    %175 = vmatpush1.bf16.msra.mxu0 %v151
    %176 = vmatprep.subr.bf16.mxu0 0
    %177 = vmatpush1.bf16.msra.mxu0 0
    %178 = vmatprep.subr.bf16.mxu0 0
    %179 = vmatpush1.bf16.msra.mxu0 0
    %180 = vmatprep.subr.bf16.mxu0 0
    %181 = vmatpush1.bf16.msra.mxu0 0
    %182 = vmatprep.subr.bf16.mxu0 0
    %183 = vmatpush1.bf16.msra.mxu0 0
    %184 = vmatprep.subr.bf16.mxu0 0
    %185 = vmatpush1.bf16.msra.mxu0 0
    %186 = vmatprep.subr.bf16.mxu0 0
    %187 = vmatpush1.bf16.msra.mxu0 0
    %188 = vmatprep.subr.bf16.mxu0 0
    %189 = vmatpush1.bf16.msra.mxu0 0
    %190 = vmatprep.subr.bf16.mxu0 0
    %191 = vmatpush1.bf16.msra.mxu0 0
    %192 = vmatprep.mubr.bf16.mxu0 0
    %193 = vmatmul.mubr.bf16.gmra.mrb[0].mxu0 %v88
    %v194 = vpop.f32.mrb[0].mxu0
    %v195 = vadd.f32 %v110, %v194
    %v196 = vpop.f32.mrb[0].mxu0
    %v197 = vpop.f32.mrb[0].mxu0
    %v198 = vpop.f32.mrb[0].mxu0
    %199 = vdwg.mxu0
    %vm200 = vcmask 64512
    %201 = vst.msk [vmem:[#allocation2] sm:$0xff] %vm200, %v195
    // Predicated region
    $region22: #{net_forward.1} parent=1 // pred_check
      _
    $region23: #{net_forward.1} parent=1 // pred_check_branch
      %203 = sbr.rel (0) target = $region25
    $region24: #{net_forward.1} parent=1 // pred_region
      %s205 = ssub.s32 128, 128
      %206 = vsyncadd [#allocation3], %s205
      %s208 = sshll.u32 [#allocation2], 4
      %s209 = int_to_ptr.vmem [resolvable:$true] %s208
      %211 = dma.vmem_to_hbm [thread:$0]  %s209, 128, %s5, [#allocation3]
    $region25: #{net_forward.1} parent=1 // pred_fallthru
      _
    // Predicated region
    $region26: #{net_forward.1} parent=1 // pred_check
      _
    $region27: #{net_forward.1} parent=1 // pred_check_branch
      %213 = sbr.rel (0) target = $region29
    $region28: #{net_forward.1} parent=1 // pred_region
      %214 = dma.done [#allocation3], 128
    $region29: #{net_forward.1} parent=1 // pred_fallthru
      _
    %215 = vsyncpa [#allocation3], 1

</llo_original>
